<compile_context>
chip_gen: v7x
topology: tpu7x:2x2x1
jax: 0.10.0
libtpu: 0.0.40
codegen_flags: <defaults>
</compile_context>

<pallas_src>
import functools

import jax
import jax.numpy as jnp
from jax.experimental import pallas as pl
from jax.experimental.pallas import tpu as pltpu


def _conv_bn_relu6_kernel(xp_ref, w_ref, sb_ref, o_ref, *, stride, K, NB, TH, Wo):
    """Fused conv + folded-BN + ReLU6 for one (batch-block, output-row-tile) grid point.

    xp_ref : (s, s, NB, Hq, Wq, Cin) bf16   stride-phase-decomposed, zero-padded input block
    w_ref  : (K*K*Cin, Cp)           bf16   conv weights, Cout zero-padded to Cp (128-mult)
    sb_ref : (2, Cp)                 f32    row 0 = folded BN scale, row 1 = folded BN bias
    o_ref  : (NB, TH*Wo, Cp)         f32    lane-dense output tile
    """
    s = stride
    r = pl.program_id(1)                       # output-row tile index
    row0 = pl.multiple_of(r * TH, TH)          # first output row of this tile (== hq base row)

    # im2col: K*K contiguous static slices of the phase-decomposed slab, concatenated on the
    # channel axis -> one wide-contraction MXU matmul instead of K*K tiny ones.
    taps = []
    for kh in range(K):
        for kw in range(K):
            patch = xp_ref[kh % s, kw % s, :,
                           pl.ds(row0 + kh // s, TH),
                           (kw // s):(kw // s) + Wo, :]        # (NB, TH, Wo, Cin) bf16
            taps.append(patch)
    a = jnp.concatenate(taps, axis=-1)                         # (NB, TH, Wo, K*K*Cin)
    a = a.reshape(NB * TH * Wo, a.shape[-1])                   # (NB*TH*Wo, K*K*Cin)

    acc = jnp.dot(a, w_ref[...], preferred_element_type=jnp.float32)   # (NB*TH*Wo, Cp) f32

    y = acc * sb_ref[0:1, :] + sb_ref[1:2, :]                  # folded BatchNorm (f32)
    y = jnp.clip(y, 0.0, 6.0)                                  # ReLU6
    o_ref[...] = y.reshape(o_ref.shape).astype(o_ref.dtype)


def _pick_tiles(N, Ho, Wo, in_block_bytes, row_cap=512, in_budget_bytes=4 << 20):
    """Pick (NB images per step, TH output rows per tile).

    TH: largest divisor of Ho whose tile rows (TH*Wo) are sublane-aligned and <= row_cap.
    NB: if a whole image fits under the row cap, pack several images per grid step to amortize
        per-step overhead and feed the MXU more rows at once (bounded by the input-block budget).
    """
    cands = [d for d in range(1, Ho + 1)
             if Ho % d == 0 and ((d * Wo) % 8 == 0 or d == Ho) and d * Wo <= row_cap]
    if cands:
        TH = max(cands)
    else:
        aligned = [d for d in range(1, Ho + 1) if Ho % d == 0 and (d * Wo) % 8 == 0]
        TH = min(aligned) if aligned else Ho   # fallback: full-dim block (always legal)

    NB = 1
    if TH == Ho:
        for nb in range(N, 0, -1):
            if (N % nb == 0 and nb * Ho * Wo <= row_cap
                    and nb * in_block_bytes <= in_budget_bytes):
                NB = nb
                break
    return NB, TH


def conv_bn_relu6(x_nchw, weight_oihw, gamma, beta, running_mean, running_var,
                  *, stride, eps=1e-5):
    """Wrapper: padding / layout / BN folding in plain JAX, hot path in one Pallas kernel."""
    N, Cin, H, W = x_nchw.shape
    Cout, _, K, _ = weight_oihw.shape
    s = int(stride)

    # --- TF "SAME" padding (Conv2d_tf) -------------------------------------
    Ho = -(-H // s)
    Wo = -(-W // s)
    pad_h = max((Ho - 1) * s + K - H, 0)
    pad_w = max((Wo - 1) * s + K - W, 0)
    pad_t, pad_l = pad_h // 2, pad_w // 2

    # Padded buffer sized for the stride-phase decomposition (extra zeros are harmless).
    Hq = Ho + (K - 1) // s
    Wq = Wo + (K - 1) // s
    Hp, Wp = Hq * s, Wq * s

    x = jnp.transpose(x_nchw, (0, 2, 3, 1)).astype(jnp.bfloat16)            # NHWC, bf16
    xpad = jnp.pad(x, ((0, 0),
                       (pad_t, Hp - H - pad_t),
                       (pad_l, Wp - W - pad_l),
                       (0, 0)))
    # Phase decomposition: xp[ph, pw, n, hq, wq, c] == xpad[n, hq*s + ph, wq*s + pw, c]
    xp = xpad.reshape(N, Hq, s, Wq, s, Cin).transpose(2, 4, 0, 1, 3, 5)     # (s,s,N,Hq,Wq,Cin)

    # Weights -> (K*K*Cin, Cp), columns zero-padded to a lane-dense 128 multiple.
    Cp = ((Cout + 127) // 128) * 128
    w2 = jnp.transpose(weight_oihw, (2, 3, 1, 0)).reshape(K * K * Cin, Cout)
    w2 = jnp.pad(w2, ((0, 0), (0, Cp - Cout))).astype(jnp.bfloat16)

    # Fold eval-mode BatchNorm into per-channel scale / bias (f32 epilogue), stacked (2, Cp).
    scale = gamma / jnp.sqrt(running_var + eps)
    bias = beta - running_mean * scale
    sb = jnp.stack([jnp.pad(scale, (0, Cp - Cout)),
                    jnp.pad(bias, (0, Cp - Cout))]).astype(jnp.float32)     # (2, Cp)

    in_block_bytes = s * s * Hq * Wq * Cin * 2                              # one bf16 image slab
    NB, TH = _pick_tiles(N, Ho, Wo, in_block_bytes)
    n_row_tiles = Ho // TH

    kernel = functools.partial(_conv_bn_relu6_kernel, stride=s, K=K, NB=NB, TH=TH, Wo=Wo)

    flops = 2 * N * Ho * Wo * K * K * Cin * Cout
    bytes_accessed = (xp.size * 2 + w2.size * 2 + sb.size * 4
                      + N * Ho * Wo * Cp * 4)

    out = pl.pallas_call(
        kernel,
        out_shape=jax.ShapeDtypeStruct((N, Ho * Wo, Cp), jnp.float32),
        grid=(N // NB, n_row_tiles),
        in_specs=[
            # Whole (padded, phase-decomposed) image block resident across the row-tile axis.
            pl.BlockSpec((s, s, NB, Hq, Wq, Cin), lambda b, r: (0, 0, b, 0, 0, 0)),
            pl.BlockSpec((K * K * Cin, Cp), lambda b, r: (0, 0)),
            pl.BlockSpec((2, Cp), lambda b, r: (0, 0)),
        ],
        out_specs=pl.BlockSpec((NB, TH * Wo, Cp), lambda b, r: (b, r, 0)),
        compiler_params=pltpu.CompilerParams(
            dimension_semantics=("parallel", "parallel"),
            vmem_limit_bytes=32 * 1024 * 1024),
        cost_estimate=pl.CostEstimate(flops=flops, transcendentals=0,
                                      bytes_accessed=bytes_accessed),
    )(xp, w2, sb)

    out = out[:, :, :Cout].reshape(N, Ho, Wo, Cout)
    return jnp.transpose(out, (0, 3, 1, 2)).astype(x_nchw.dtype)            # back to NCHW


def _reference(x_nchw, weight_oihw, gamma, beta, running_mean, running_var,
               *, stride, eps=1e-5):
    """Pure-JAX reference (lax conv, f32 accumulation) for a sanity check."""
    Cout, _, K, _ = weight_oihw.shape
    N, Cin, H, W = x_nchw.shape
    s = stride
    Ho, Wo = -(-H // s), -(-W // s)
    pad_h = max((Ho - 1) * s + K - H, 0)
    pad_w = max((Wo - 1) * s + K - W, 0)
    pads = ((pad_h // 2, pad_h - pad_h // 2), (pad_w // 2, pad_w - pad_w // 2))
    y = jax.lax.conv_general_dilated(
        x_nchw.astype(jnp.float32), weight_oihw.astype(jnp.float32),
        window_strides=(s, s), padding=pads,
        dimension_numbers=("NCHW", "OIHW", "NCHW"),
        precision=jax.lax.Precision.HIGHEST)
    scale = (gamma / jnp.sqrt(running_var + eps)).reshape(1, Cout, 1, 1)
    bias = (beta - running_mean * gamma / jnp.sqrt(running_var + eps)).reshape(1, Cout, 1, 1)
    return jnp.clip(y * scale + bias, 0.0, 6.0)


if __name__ == "__main__":
    # Module config: _conv_bn(inp=4, oup=8, kernel=3, stride=2)
    inp, oup, ksize, stride = 4, 8, 3, 2
    N, H, W = 2, 16, 16

    key = jax.random.PRNGKey(0)
    kx, kw, kg, kb, km, kv = jax.random.split(key, 6)

    x = jax.random.normal(kx, (N, inp, H, W), dtype=jnp.float32)
    weight = jax.random.normal(kw, (oup, inp, ksize, ksize), dtype=jnp.float32) * 0.1
    gamma = 1.0 + 0.1 * jax.random.normal(kg, (oup,), dtype=jnp.float32)
    beta = 0.1 * jax.random.normal(kb, (oup,), dtype=jnp.float32)
    running_mean = 0.1 * jax.random.normal(km, (oup,), dtype=jnp.float32)
    running_var = jax.random.uniform(kv, (oup,), dtype=jnp.float32, minval=0.5, maxval=1.5)

    # The kernel computes the conv with bf16 operands (f32 accumulation); compare against the
    # f32 reference at matched (bf16-quantized) inputs so the check validates the math tightly.
    xq = x.astype(jnp.bfloat16).astype(jnp.float32)
    wq = weight.astype(jnp.bfloat16).astype(jnp.float32)

    fwd = jax.jit(functools.partial(conv_bn_relu6, stride=stride))
    out = fwd(xq, wq, gamma, beta, running_mean, running_var)
    out = jax.block_until_ready(out)

    ref = _reference(xq, wq, gamma, beta, running_mean, running_var, stride=stride)

    Ho, Wo = -(-H // stride), -(-W // stride)
    assert out.shape == (N, oup, Ho, Wo), out.shape
    assert jnp.allclose(out, ref, rtol=1e-3, atol=1e-3), "mismatch vs reference conv"

    print("KERNEL_OK")
</pallas_src>

<mosaic_0001>
module attributes {stable_mosaic.version = 11 : i64} {
  func.func @_conv_bn_relu6_kernel(%arg0: i32, %arg1: i32, %arg2: memref<2x2x2x9x9x4xbf16, #tpu.memory_space<vmem>>, %arg3: memref<36x128xbf16, #tpu.memory_space<vmem>>, %arg4: memref<2x128xf32, #tpu.memory_space<vmem>>, %arg5: memref<2x64x128xf32, #tpu.memory_space<vmem>>) attributes {dimension_semantics = [#tpu.dimension_semantics<parallel>, #tpu.dimension_semantics<parallel>], iteration_bounds = array<i64: 1, 1>, scalar_prefetch = 0 : i64, scratch_operands = 0 : i64, tpu.core_type = #tpu.core_type<tc>, window_params = [{transform_indices = @transform_0, window_bounds = array<i64: 2, 2, 2, 9, 9, 4>}, {pipeline_mode = #tpu.pipeline_mode<synchronous>, transform_indices = @transform_1, window_bounds = array<i64: 36, 128>}, {pipeline_mode = #tpu.pipeline_mode<synchronous>, transform_indices = @transform_2, window_bounds = array<i64: 2, 128>}, {transform_indices = @transform_3, window_bounds = array<i64: 2, 64, 128>}]} {
    %c8_i32 = arith.constant 8 : i32
    %0 = arith.muli %arg1, %c8_i32 : i32
    %1 = tpu.assume_multiple %0, 8 : i32
    %c0_i32 = arith.constant 0 : i32
    %2 = arith.addi %1, %c0_i32 : i32
    %c0 = arith.constant 0 : index
    %c0_0 = arith.constant 0 : index
    %c0_1 = arith.constant 0 : index
    %3 = arith.index_cast %2 : i32 to index
    %c0_2 = arith.constant 0 : index
    %c0_3 = arith.constant 0 : index
    %4 = vector.load %arg2[%c0, %c0_0, %c0_1, %3, %c0_2, %c0_3] : memref<2x2x2x9x9x4xbf16, #tpu.memory_space<vmem>>, vector<1x1x2x8x8x4xbf16>
    %5 = vector.shape_cast %4 : vector<1x1x2x8x8x4xbf16> to vector<2x8x8x4xbf16>
    %c0_i32_4 = arith.constant 0 : i32
    %6 = arith.addi %1, %c0_i32_4 : i32
    %c0_5 = arith.constant 0 : index
    %c1 = arith.constant 1 : index
    %c0_6 = arith.constant 0 : index
    %7 = arith.index_cast %6 : i32 to index
    %c0_7 = arith.constant 0 : index
    %c0_8 = arith.constant 0 : index
    %8 = vector.load %arg2[%c0_5, %c1, %c0_6, %7, %c0_7, %c0_8] : memref<2x2x2x9x9x4xbf16, #tpu.memory_space<vmem>>, vector<1x1x2x8x8x4xbf16>
    %9 = vector.shape_cast %8 : vector<1x1x2x8x8x4xbf16> to vector<2x8x8x4xbf16>
    %c0_i32_9 = arith.constant 0 : i32
    %10 = arith.addi %1, %c0_i32_9 : i32
    %c0_10 = arith.constant 0 : index
    %c0_11 = arith.constant 0 : index
    %c0_12 = arith.constant 0 : index
    %11 = arith.index_cast %10 : i32 to index
    %c1_13 = arith.constant 1 : index
    %c0_14 = arith.constant 0 : index
    %12 = vector.load %arg2[%c0_10, %c0_11, %c0_12, %11, %c1_13, %c0_14] : memref<2x2x2x9x9x4xbf16, #tpu.memory_space<vmem>>, vector<1x1x2x8x8x4xbf16>
    %13 = vector.shape_cast %12 : vector<1x1x2x8x8x4xbf16> to vector<2x8x8x4xbf16>
    %c0_i32_15 = arith.constant 0 : i32
    %14 = arith.addi %1, %c0_i32_15 : i32
    %c1_16 = arith.constant 1 : index
    %c0_17 = arith.constant 0 : index
    %c0_18 = arith.constant 0 : index
    %15 = arith.index_cast %14 : i32 to index
    %c0_19 = arith.constant 0 : index
    %c0_20 = arith.constant 0 : index
    %16 = vector.load %arg2[%c1_16, %c0_17, %c0_18, %15, %c0_19, %c0_20] : memref<2x2x2x9x9x4xbf16, #tpu.memory_space<vmem>>, vector<1x1x2x8x8x4xbf16>
    %17 = vector.shape_cast %16 : vector<1x1x2x8x8x4xbf16> to vector<2x8x8x4xbf16>
    %c0_i32_21 = arith.constant 0 : i32
    %18 = arith.addi %1, %c0_i32_21 : i32
    %c1_22 = arith.constant 1 : index
    %c1_23 = arith.constant 1 : index
    %c0_24 = arith.constant 0 : index
    %19 = arith.index_cast %18 : i32 to index
    %c0_25 = arith.constant 0 : index
    %c0_26 = arith.constant 0 : index
    %20 = vector.load %arg2[%c1_22, %c1_23, %c0_24, %19, %c0_25, %c0_26] : memref<2x2x2x9x9x4xbf16, #tpu.memory_space<vmem>>, vector<1x1x2x8x8x4xbf16>
    %21 = vector.shape_cast %20 : vector<1x1x2x8x8x4xbf16> to vector<2x8x8x4xbf16>
    %c0_i32_27 = arith.constant 0 : i32
    %22 = arith.addi %1, %c0_i32_27 : i32
    %c1_28 = arith.constant 1 : index
    %c0_29 = arith.constant 0 : index
    %c0_30 = arith.constant 0 : index
    %23 = arith.index_cast %22 : i32 to index
    %c1_31 = arith.constant 1 : index
    %c0_32 = arith.constant 0 : index
    %24 = vector.load %arg2[%c1_28, %c0_29, %c0_30, %23, %c1_31, %c0_32] : memref<2x2x2x9x9x4xbf16, #tpu.memory_space<vmem>>, vector<1x1x2x8x8x4xbf16>
    %25 = vector.shape_cast %24 : vector<1x1x2x8x8x4xbf16> to vector<2x8x8x4xbf16>
    %c1_i32 = arith.constant 1 : i32
    %26 = arith.addi %1, %c1_i32 : i32
    %c0_33 = arith.constant 0 : index
    %c0_34 = arith.constant 0 : index
    %c0_35 = arith.constant 0 : index
    %27 = arith.index_cast %26 : i32 to index
    %c0_36 = arith.constant 0 : index
    %c0_37 = arith.constant 0 : index
    %28 = vector.load %arg2[%c0_33, %c0_34, %c0_35, %27, %c0_36, %c0_37] : memref<2x2x2x9x9x4xbf16, #tpu.memory_space<vmem>>, vector<1x1x2x8x8x4xbf16>
    %29 = vector.shape_cast %28 : vector<1x1x2x8x8x4xbf16> to vector<2x8x8x4xbf16>
    %c1_i32_38 = arith.constant 1 : i32
    %30 = arith.addi %1, %c1_i32_38 : i32
    %c0_39 = arith.constant 0 : index
    %c1_40 = arith.constant 1 : index
    %c0_41 = arith.constant 0 : index
    %31 = arith.index_cast %30 : i32 to index
    %c0_42 = arith.constant 0 : index
    %c0_43 = arith.constant 0 : index
    %32 = vector.load %arg2[%c0_39, %c1_40, %c0_41, %31, %c0_42, %c0_43] : memref<2x2x2x9x9x4xbf16, #tpu.memory_space<vmem>>, vector<1x1x2x8x8x4xbf16>
    %33 = vector.shape_cast %32 : vector<1x1x2x8x8x4xbf16> to vector<2x8x8x4xbf16>
    %c1_i32_44 = arith.constant 1 : i32
    %34 = arith.addi %1, %c1_i32_44 : i32
    %c0_45 = arith.constant 0 : index
    %c0_46 = arith.constant 0 : index
    %c0_47 = arith.constant 0 : index
    %35 = arith.index_cast %34 : i32 to index
    %c1_48 = arith.constant 1 : index
    %c0_49 = arith.constant 0 : index
    %36 = vector.load %arg2[%c0_45, %c0_46, %c0_47, %35, %c1_48, %c0_49] : memref<2x2x2x9x9x4xbf16, #tpu.memory_space<vmem>>, vector<1x1x2x8x8x4xbf16>
    %37 = vector.shape_cast %36 : vector<1x1x2x8x8x4xbf16> to vector<2x8x8x4xbf16>
    %38 = tpu.concatenate %5, %9, %13, %17, %21, %25, %29, %33, %37 in 3 : vector<2x8x8x4xbf16>, vector<2x8x8x4xbf16>, vector<2x8x8x4xbf16>, vector<2x8x8x4xbf16>, vector<2x8x8x4xbf16>, vector<2x8x8x4xbf16>, vector<2x8x8x4xbf16>, vector<2x8x8x4xbf16>, vector<2x8x8x4xbf16> -> vector<2x8x8x36xbf16>
    %39 = vector.shape_cast %38 : vector<2x8x8x36xbf16> to vector<128x36xbf16>
    %c0_50 = arith.constant 0 : index
    %c0_51 = arith.constant 0 : index
    %40 = vector.load %arg3[%c0_50, %c0_51] : memref<36x128xbf16, #tpu.memory_space<vmem>>, vector<36x128xbf16>
    %cst = arith.constant dense<0.000000e+00> : vector<128x128xf32>
    %41 = tpu.matmul %39, %40, %cst {dimension_numbers = #tpu.dot_dimension_numbers<[1], [0], [0], [1], [0, 0, 1, 1], [], []>} : vector<128x36xbf16>, vector<36x128xbf16>, vector<128x128xf32> -> vector<128x128xf32>
    %c0_52 = arith.constant 0 : index
    %c0_53 = arith.constant 0 : index
    %42 = vector.load %arg4[%c0_52, %c0_53] : memref<2x128xf32, #tpu.memory_space<vmem>>, vector<1x128xf32>
    %43 = vector.broadcast %42 : vector<1x128xf32> to vector<128x128xf32>
    %44 = arith.mulf %41, %43 : vector<128x128xf32>
    %c1_54 = arith.constant 1 : index
    %c0_55 = arith.constant 0 : index
    %45 = vector.load %arg4[%c1_54, %c0_55] : memref<2x128xf32, #tpu.memory_space<vmem>>, vector<1x128xf32>
    %46 = vector.broadcast %45 : vector<1x128xf32> to vector<128x128xf32>
    %47 = arith.addf %44, %46 : vector<128x128xf32>
    %cst_56 = arith.constant 0.000000e+00 : f32
    %cst_57 = arith.constant 6.000000e+00 : f32
    %48 = vector.broadcast %cst_56 : f32 to vector<128x128xf32>
    %49 = arith.maximumf %48, %47 : vector<128x128xf32>
    %50 = vector.broadcast %cst_57 : f32 to vector<128x128xf32>
    %51 = arith.minimumf %50, %49 : vector<128x128xf32>
    %52 = vector.shape_cast %51 : vector<128x128xf32> to vector<2x64x128xf32>
    %c0_58 = arith.constant 0 : index
    %c0_59 = arith.constant 0 : index
    %c0_60 = arith.constant 0 : index
    %53 = vector.load %arg5[%c0_58, %c0_59, %c0_60] : memref<2x64x128xf32, #tpu.memory_space<vmem>>, vector<2x64x128xf32>
    tpu.vector_store %arg5[%c0_58, %c0_59, %c0_60], %52 {strides = array<i32>} : memref<2x64x128xf32, #tpu.memory_space<vmem>>, vector<2x64x128xf32>,
    return
  }
  func.func @transform_0(%arg0: i32, %arg1: i32) -> (i32, i32, i32, i32, i32, i32) {
    %c0_i32 = arith.constant 0 : i32
    %c0_i32_0 = arith.constant 0 : i32
    %c0_i32_1 = arith.constant 0 : i32
    %c0_i32_2 = arith.constant 0 : i32
    %c0_i32_3 = arith.constant 0 : i32
    %c0_i32_4 = arith.constant 0 : i32
    return %c0_i32, %c0_i32_0, %arg0, %c0_i32_1, %c0_i32_2, %c0_i32_3 : i32, i32, i32, i32, i32, i32
  }
  func.func @transform_1(%arg0: i32, %arg1: i32) -> (i32, i32) {
    %c0_i32 = arith.constant 0 : i32
    %c0_i32_0 = arith.constant 0 : i32
    %c0_i32_1 = arith.constant 0 : i32
    return %c0_i32, %c0_i32_0 : i32, i32
  }
  func.func @transform_2(%arg0: i32, %arg1: i32) -> (i32, i32) {
    %c0_i32 = arith.constant 0 : i32
    %c0_i32_0 = arith.constant 0 : i32
    %c0_i32_1 = arith.constant 0 : i32
    return %c0_i32, %c0_i32_0 : i32, i32
  }
  func.func @transform_3(%arg0: i32, %arg1: i32) -> (i32, i32, i32) {
    %c0_i32 = arith.constant 0 : i32
    %c0_i32_0 = arith.constant 0 : i32
    return %arg0, %arg1, %c0_i32 : i32, i32, i32
  }
}

</mosaic_0001>

<llo_original>
// kernel: conv_bn_relu6.1
$region0: #{conv_bn_relu6.1}
  #allocation0 [shape = 'u32[]', space=smem, size = 0x4, offset = 0x4, fixed_abs, tag = 'smem constant byte address 0x4 - core index']
  #allocation1 [shape = 'u32[144,128]{1,0:T(1,128)}', space=vmem, size = 0x12000, scoped, tag = 'internal scratch']
  %s0 = inlined_call_operand.vmem [shape: bf16[2,2,2,9,9,4], index: 0, kind: input, shape index: {}]
  %s1 = inlined_call_operand.vmem [shape: bf16[36,128], index: 1, kind: input, shape index: {}]
  %s2 = inlined_call_operand.vmem [shape: f32[2,128], index: 2, kind: input, shape index: {}]
  %s3 = inlined_call_operand.vmem [shape: f32[2,64,128], index: 3, kind: output, shape index: {}]
  %s4 = sld [smem:[#allocation0]]
  $region22: #{conv_bn_relu6.1} parent=0
    _
  %s6 = ssub.s32 1, %s4
  %s7 = scalar_select 0, %s6, %s4
  // Predicated region
  $region2: #{conv_bn_relu6.1} parent=0 // pred_check
    _
  $region3: #{conv_bn_relu6.1} parent=0 // pred_check_branch
    %9 = sbr.rel (0) target = $region5
  $region4: #{conv_bn_relu6.1} parent=0 // pred_region
    _
  $region5: #{conv_bn_relu6.1} parent=0 // pred_fallthru
    _
  // Predicated region
  $region6: #{conv_bn_relu6.1} parent=0 // pred_check
    _
  $region7: #{conv_bn_relu6.1} parent=0 // pred_check_branch
    %11 = sbr.rel (0) target = $region9
  $region8: #{conv_bn_relu6.1} parent=0 // pred_region
    _
  $region9: #{conv_bn_relu6.1} parent=0 // pred_fallthru
    _
  // Predicated region
  $region10: #{conv_bn_relu6.1} parent=0 // pred_check
    _
  $region11: #{conv_bn_relu6.1} parent=0 // pred_check_branch
    %13 = sbr.rel (0) target = $region13
  $region12: #{conv_bn_relu6.1} parent=0 // pred_region
    _
  $region13: #{conv_bn_relu6.1} parent=0 // pred_fallthru
    _
  %s15 = smul.u32 0, 8
  %s16 = smul.u32 %s15, 2
  %s17 = smul.addr %s16, 4
  %s18 = scalar_lea.vmem %s0, %s17
  %v19 = vld [vmem:[%s18] sm:$0xf]
  %v20 = vld [vmem:[%s18 + $0x8] sm:$0xf]
  %v21 = vld [vmem:[%s18 + $0x10] sm:$0xf]
  %v22 = vld [vmem:[%s18 + $0x18] sm:$0xf]
  %v23 = vld [vmem:[%s18 + $0x20] sm:$0xf]
  %v24 = vld [vmem:[%s18 + $0x28] sm:$0xf]
  %v25 = vld [vmem:[%s18 + $0x30] sm:$0xf]
  %v26 = vld [vmem:[%s18 + $0x38] sm:$0xf]
  %v27 = vld [vmem:[%s18 + $0x48] sm:$0xf]
  %v28 = vld [vmem:[%s18 + $0x50] sm:$0xf]
  %v29 = vld [vmem:[%s18 + $0x58] sm:$0xf]
  %v30 = vld [vmem:[%s18 + $0x60] sm:$0xf]
  %v31 = vld [vmem:[%s18 + $0x68] sm:$0xf]
  %v32 = vld [vmem:[%s18 + $0x70] sm:$0xf]
  %v33 = vld [vmem:[%s18 + $0x78] sm:$0xf]
  %v34 = vld [vmem:[%s18 + $0x80] sm:$0xf]
  %s35 = sadd.s32 %s16, 36
  %s36 = smul.addr %s35, 4
  %s37 = scalar_lea.vmem %s0, %s36
  %v38 = vld [vmem:[%s37] sm:$0xf]
  %v39 = vld [vmem:[%s37 + $0x8] sm:$0xf]
  %v40 = vld [vmem:[%s37 + $0x10] sm:$0xf]
  %v41 = vld [vmem:[%s37 + $0x18] sm:$0xf]
  %v42 = vld [vmem:[%s37 + $0x20] sm:$0xf]
  %v43 = vld [vmem:[%s37 + $0x28] sm:$0xf]
  %v44 = vld [vmem:[%s37 + $0x30] sm:$0xf]
  %v45 = vld [vmem:[%s37 + $0x38] sm:$0xf]
  %v46 = vld [vmem:[%s37 + $0x48] sm:$0xf]
  %v47 = vld [vmem:[%s37 + $0x50] sm:$0xf]
  %v48 = vld [vmem:[%s37 + $0x58] sm:$0xf]
  %v49 = vld [vmem:[%s37 + $0x60] sm:$0xf]
  %v50 = vld [vmem:[%s37 + $0x68] sm:$0xf]
  %v51 = vld [vmem:[%s37 + $0x70] sm:$0xf]
  %v52 = vld [vmem:[%s37 + $0x78] sm:$0xf]
  %v53 = vld [vmem:[%s37 + $0x80] sm:$0xf]
  %v54 = vld [vmem:[%s18 + $0x4] sm:$0x1]
  %v55 = vld [vmem:[%s18 + $0xc] sm:$0x1]
  %v56 = vld [vmem:[%s18 + $0x14] sm:$0x1]
  %v57 = vld [vmem:[%s18 + $0x1c] sm:$0x1]
  %v58 = vld [vmem:[%s18 + $0x24] sm:$0x1]
  %v59 = vld [vmem:[%s18 + $0x2c] sm:$0x1]
  %v60 = vld [vmem:[%s18 + $0x34] sm:$0x1]
  %v61 = vld [vmem:[%s18 + $0x3c] sm:$0x1]
  %v62 = vld [vmem:[%s18 + $0x4c] sm:$0x1]
  %v63 = vld [vmem:[%s18 + $0x54] sm:$0x1]
  %v64 = vld [vmem:[%s18 + $0x5c] sm:$0x1]
  %v65 = vld [vmem:[%s18 + $0x64] sm:$0x1]
  %v66 = vld [vmem:[%s18 + $0x6c] sm:$0x1]
  %v67 = vld [vmem:[%s18 + $0x74] sm:$0x1]
  %v68 = vld [vmem:[%s18 + $0x7c] sm:$0x1]
  %v69 = vld [vmem:[%s18 + $0x84] sm:$0x1]
  %s70 = sadd.s32 %s16, 72
  %s71 = smul.addr %s70, 4
  %s72 = scalar_lea.vmem %s0, %s71
  %v73 = vld [vmem:[%s72] sm:$0xf]
  %v74 = vld [vmem:[%s72 + $0x8] sm:$0xf]
  %v75 = vld [vmem:[%s72 + $0x10] sm:$0xf]
  %v76 = vld [vmem:[%s72 + $0x18] sm:$0xf]
  %v77 = vld [vmem:[%s72 + $0x20] sm:$0xf]
  %v78 = vld [vmem:[%s72 + $0x28] sm:$0xf]
  %v79 = vld [vmem:[%s72 + $0x30] sm:$0xf]
  %v80 = vld [vmem:[%s72 + $0x38] sm:$0xf]
  %v81 = vld [vmem:[%s72 + $0x48] sm:$0xf]
  %v82 = vld [vmem:[%s72 + $0x50] sm:$0xf]
  %v83 = vld [vmem:[%s72 + $0x58] sm:$0xf]
  %v84 = vld [vmem:[%s72 + $0x60] sm:$0xf]
  %v85 = vld [vmem:[%s72 + $0x68] sm:$0xf]
  %v86 = vld [vmem:[%s72 + $0x70] sm:$0xf]
  %v87 = vld [vmem:[%s72 + $0x78] sm:$0xf]
  %v88 = vld [vmem:[%s72 + $0x80] sm:$0xf]
  %s89 = sadd.s32 %s35, 72
  %s90 = smul.addr %s89, 4
  %s91 = scalar_lea.vmem %s0, %s90
  %v92 = vld [vmem:[%s91] sm:$0xf]
  %v93 = vld [vmem:[%s91 + $0x8] sm:$0xf]
  %v94 = vld [vmem:[%s91 + $0x10] sm:$0xf]
  %v95 = vld [vmem:[%s91 + $0x18] sm:$0xf]
  %v96 = vld [vmem:[%s91 + $0x20] sm:$0xf]
  %v97 = vld [vmem:[%s91 + $0x28] sm:$0xf]
  %v98 = vld [vmem:[%s91 + $0x30] sm:$0xf]
  %v99 = vld [vmem:[%s91 + $0x38] sm:$0xf]
  %v100 = vld [vmem:[%s91 + $0x48] sm:$0xf]
  %v101 = vld [vmem:[%s91 + $0x50] sm:$0xf]
  %v102 = vld [vmem:[%s91 + $0x58] sm:$0xf]
  %v103 = vld [vmem:[%s91 + $0x60] sm:$0xf]
  %v104 = vld [vmem:[%s91 + $0x68] sm:$0xf]
  %v105 = vld [vmem:[%s91 + $0x70] sm:$0xf]
  %v106 = vld [vmem:[%s91 + $0x78] sm:$0xf]
  %v107 = vld [vmem:[%s91 + $0x80] sm:$0xf]
  %v108 = vld [vmem:[%s72 + $0x4] sm:$0x1]
  %v109 = vld [vmem:[%s72 + $0xc] sm:$0x1]
  %v110 = vld [vmem:[%s72 + $0x14] sm:$0x1]
  %v111 = vld [vmem:[%s72 + $0x1c] sm:$0x1]
  %v112 = vld [vmem:[%s72 + $0x24] sm:$0x1]
  %v113 = vld [vmem:[%s72 + $0x2c] sm:$0x1]
  %v114 = vld [vmem:[%s72 + $0x34] sm:$0x1]
  %v115 = vld [vmem:[%s72 + $0x3c] sm:$0x1]
  %v116 = vld [vmem:[%s72 + $0x4c] sm:$0x1]
  %v117 = vld [vmem:[%s72 + $0x54] sm:$0x1]
  %v118 = vld [vmem:[%s72 + $0x5c] sm:$0x1]
  %v119 = vld [vmem:[%s72 + $0x64] sm:$0x1]
  %v120 = vld [vmem:[%s72 + $0x6c] sm:$0x1]
  %v121 = vld [vmem:[%s72 + $0x74] sm:$0x1]
  %v122 = vld [vmem:[%s72 + $0x7c] sm:$0x1]
  %v123 = vld [vmem:[%s72 + $0x84] sm:$0x1]
  %s124 = sadd.s32 %s15, 1
  %s125 = smul.u32 %s124, 2
  %s126 = smul.addr %s125, 4
  %s127 = scalar_lea.vmem %s0, %s126
  %v128 = vld [vmem:[%s127] sm:$0xf]
  %v129 = vld [vmem:[%s127 + $0x8] sm:$0xf]
  %v130 = vld [vmem:[%s127 + $0x10] sm:$0xf]
  %v131 = vld [vmem:[%s127 + $0x18] sm:$0xf]
  %v132 = vld [vmem:[%s127 + $0x20] sm:$0xf]
  %v133 = vld [vmem:[%s127 + $0x28] sm:$0xf]
  %v134 = vld [vmem:[%s127 + $0x30] sm:$0xf]
  %v135 = vld [vmem:[%s127 + $0x38] sm:$0xf]
  %v136 = vld [vmem:[%s127 + $0x48] sm:$0xf]
  %v137 = vld [vmem:[%s127 + $0x50] sm:$0xf]
  %v138 = vld [vmem:[%s127 + $0x58] sm:$0xf]
  %v139 = vld [vmem:[%s127 + $0x60] sm:$0xf]
  %v140 = vld [vmem:[%s127 + $0x68] sm:$0xf]
  %v141 = vld [vmem:[%s127 + $0x70] sm:$0xf]
  %v142 = vld [vmem:[%s127 + $0x78] sm:$0xf]
  %v143 = vld [vmem:[%s127 + $0x80] sm:$0xf]
  %s144 = sadd.s32 %s125, 36
  %s145 = smul.addr %s144, 4
  %s146 = scalar_lea.vmem %s0, %s145
  %v147 = vld [vmem:[%s146] sm:$0xf]
  %v148 = vld [vmem:[%s146 + $0x8] sm:$0xf]
  %v149 = vld [vmem:[%s146 + $0x10] sm:$0xf]
  %v150 = vld [vmem:[%s146 + $0x18] sm:$0xf]
  %v151 = vld [vmem:[%s146 + $0x20] sm:$0xf]
  %v152 = vld [vmem:[%s146 + $0x28] sm:$0xf]
  %v153 = vld [vmem:[%s146 + $0x30] sm:$0xf]
  %v154 = vld [vmem:[%s146 + $0x38] sm:$0xf]
  %v155 = vld [vmem:[%s146 + $0x48] sm:$0xf]
  %v156 = vld [vmem:[%s146 + $0x50] sm:$0xf]
  %v157 = vld [vmem:[%s146 + $0x58] sm:$0xf]
  %v158 = vld [vmem:[%s146 + $0x60] sm:$0xf]
  %v159 = vld [vmem:[%s146 + $0x68] sm:$0xf]
  %v160 = vld [vmem:[%s146 + $0x70] sm:$0xf]
  %v161 = vld [vmem:[%s146 + $0x78] sm:$0xf]
  %v162 = vld [vmem:[%s146 + $0x80] sm:$0xf]
  %v163 = vld [vmem:[%s127 + $0x4] sm:$0x1]
  %v164 = vld [vmem:[%s127 + $0xc] sm:$0x1]
  %v165 = vld [vmem:[%s127 + $0x14] sm:$0x1]
  %v166 = vld [vmem:[%s127 + $0x1c] sm:$0x1]
  %v167 = vld [vmem:[%s127 + $0x24] sm:$0x1]
  %v168 = vld [vmem:[%s127 + $0x2c] sm:$0x1]
  %v169 = vld [vmem:[%s127 + $0x34] sm:$0x1]
  %v170 = vld [vmem:[%s127 + $0x3c] sm:$0x1]
  %v171 = vld [vmem:[%s127 + $0x4c] sm:$0x1]
  %v172 = vld [vmem:[%s127 + $0x54] sm:$0x1]
  %v173 = vld [vmem:[%s127 + $0x5c] sm:$0x1]
  %v174 = vld [vmem:[%s127 + $0x64] sm:$0x1]
  %v175 = vld [vmem:[%s127 + $0x6c] sm:$0x1]
  %v176 = vld [vmem:[%s127 + $0x74] sm:$0x1]
  %v177 = vld [vmem:[%s127 + $0x7c] sm:$0x1]
  %v178 = vld [vmem:[%s127 + $0x84] sm:$0x1]
  %v195 = vunpack.c.l.b16 %v38
  %v196 = vunpack.c.l.b16 %v39
  %v197 = vunpack.c.l.b16 %v40
  %v198 = vunpack.c.l.b16 %v41
  %v199 = vunpack.c.l.b16 %v42
  %v200 = vunpack.c.l.b16 %v43
  %v201 = vunpack.c.l.b16 %v44
  %v202 = vunpack.c.l.b16 %v45
  %v203 = vunpack.c.l.b16 %v46
  %v204 = vunpack.c.l.b16 %v47
  %v205 = vunpack.c.l.b16 %v48
  %v206 = vunpack.c.l.b16 %v49
  %v207 = vunpack.c.l.b16 %v50
  %v208 = vunpack.c.l.b16 %v51
  %v209 = vunpack.c.l.b16 %v52
  %v210 = vunpack.c.l.b16 %v53
  %v211 = vpack.c.b16 %v195, %v195
  %v212 = vpack.c.b16 %v196, %v196
  %v213 = vpack.c.b16 %v197, %v197
  %v214 = vpack.c.b16 %v198, %v198
  %v215 = vpack.c.b16 %v199, %v199
  %v216 = vpack.c.b16 %v200, %v200
  %v217 = vpack.c.b16 %v201, %v201
  %v218 = vpack.c.b16 %v202, %v202
  %v219 = vpack.c.b16 %v203, %v203
  %v220 = vpack.c.b16 %v204, %v204
  %v221 = vpack.c.b16 %v205, %v205
  %v222 = vpack.c.b16 %v206, %v206
  %v223 = vpack.c.b16 %v207, %v207
  %v224 = vpack.c.b16 %v208, %v208
  %v225 = vpack.c.b16 %v209, %v209
  %v226 = vpack.c.b16 %v210, %v210
  %227 = vrot.lane.b32.xlu0 %v211, 4
  %v228 = vpop.permute.xlu0 %227
  %229 = vrot.lane.b32.xlu0 %v212, 4
  %v230 = vpop.permute.xlu0 %229
  %231 = vrot.lane.b32.xlu0 %v213, 4
  %v232 = vpop.permute.xlu0 %231
  %233 = vrot.lane.b32.xlu0 %v214, 4
  %v234 = vpop.permute.xlu0 %233
  %235 = vrot.lane.b32.xlu0 %v215, 4
  %v236 = vpop.permute.xlu0 %235
  %237 = vrot.lane.b32.xlu0 %v216, 4
  %v238 = vpop.permute.xlu0 %237
  %239 = vrot.lane.b32.xlu0 %v217, 4
  %v240 = vpop.permute.xlu0 %239
  %241 = vrot.lane.b32.xlu0 %v218, 4
  %v242 = vpop.permute.xlu0 %241
  %243 = vrot.lane.b32.xlu0 %v219, 4
  %v244 = vpop.permute.xlu0 %243
  %245 = vrot.lane.b32.xlu0 %v220, 4
  %v246 = vpop.permute.xlu0 %245
  %247 = vrot.lane.b32.xlu0 %v221, 4
  %v248 = vpop.permute.xlu0 %247
  %249 = vrot.lane.b32.xlu0 %v222, 4
  %v250 = vpop.permute.xlu0 %249
  %251 = vrot.lane.b32.xlu0 %v223, 4
  %v252 = vpop.permute.xlu0 %251
  %253 = vrot.lane.b32.xlu0 %v224, 4
  %v254 = vpop.permute.xlu0 %253
  %255 = vrot.lane.b32.xlu0 %v225, 4
  %v256 = vpop.permute.xlu0 %255
  %257 = vrot.lane.b32.xlu0 %v226, 4
  %v258 = vpop.permute.xlu0 %257
  %v291 = vunpack.c.l.b16 %v19
  %v292 = vunpack.c.l.b16 %v54
  %v293 = vunpack.c.l.b16 %v20
  %v294 = vunpack.c.l.b16 %v55
  %v295 = vunpack.c.l.b16 %v21
  %v296 = vunpack.c.l.b16 %v56
  %v297 = vunpack.c.l.b16 %v22
  %v298 = vunpack.c.l.b16 %v57
  %v299 = vunpack.c.l.b16 %v23
  %v300 = vunpack.c.l.b16 %v58
  %v301 = vunpack.c.l.b16 %v24
  %v302 = vunpack.c.l.b16 %v59
  %v303 = vunpack.c.l.b16 %v25
  %v304 = vunpack.c.l.b16 %v60
  %v305 = vunpack.c.l.b16 %v26
  %v306 = vunpack.c.l.b16 %v61
  %v307 = vunpack.c.l.b16 %v27
  %v308 = vunpack.c.l.b16 %v62
  %v309 = vunpack.c.l.b16 %v28
  %v310 = vunpack.c.l.b16 %v63
  %v311 = vunpack.c.l.b16 %v29
  %v312 = vunpack.c.l.b16 %v64
  %v313 = vunpack.c.l.b16 %v30
  %v314 = vunpack.c.l.b16 %v65
  %v315 = vunpack.c.l.b16 %v31
  %v316 = vunpack.c.l.b16 %v66
  %v317 = vunpack.c.l.b16 %v32
  %v318 = vunpack.c.l.b16 %v67
  %v319 = vunpack.c.l.b16 %v33
  %v320 = vunpack.c.l.b16 %v68
  %v321 = vunpack.c.l.b16 %v34
  %v322 = vunpack.c.l.b16 %v69
  %v323 = vpack.c.b16 %v292, %v291
  %v324 = vpack.c.b16 %v294, %v293
  %v325 = vpack.c.b16 %v296, %v295
  %v326 = vpack.c.b16 %v298, %v297
  %v327 = vpack.c.b16 %v300, %v299
  %v328 = vpack.c.b16 %v302, %v301
  %v329 = vpack.c.b16 %v304, %v303
  %v330 = vpack.c.b16 %v306, %v305
  %v331 = vpack.c.b16 %v308, %v307
  %v332 = vpack.c.b16 %v310, %v309
  %v333 = vpack.c.b16 %v312, %v311
  %v334 = vpack.c.b16 %v314, %v313
  %v335 = vpack.c.b16 %v316, %v315
  %v336 = vpack.c.b16 %v318, %v317
  %v337 = vpack.c.b16 %v320, %v319
  %v338 = vpack.c.b16 %v322, %v321
  %v340 = vshrl.u32 %v323, 16
  %v342 = vshll.u32 %v323, 16
  %v344 = vrot.slane %v342, 1
  %v345 = vor.u32 %v340, %v344
  %v347 = vshrl.u32 %v324, 16
  %v349 = vshll.u32 %v324, 16
  %v351 = vrot.slane %v349, 1
  %v352 = vor.u32 %v347, %v351
  %v354 = vshrl.u32 %v325, 16
  %v356 = vshll.u32 %v325, 16
  %v358 = vrot.slane %v356, 1
  %v359 = vor.u32 %v354, %v358
  %v361 = vshrl.u32 %v326, 16
  %v363 = vshll.u32 %v326, 16
  %v365 = vrot.slane %v363, 1
  %v366 = vor.u32 %v361, %v365
  %v368 = vshrl.u32 %v327, 16
  %v370 = vshll.u32 %v327, 16
  %v372 = vrot.slane %v370, 1
  %v373 = vor.u32 %v368, %v372
  %v375 = vshrl.u32 %v328, 16
  %v377 = vshll.u32 %v328, 16
  %v379 = vrot.slane %v377, 1
  %v380 = vor.u32 %v375, %v379
  %v382 = vshrl.u32 %v329, 16
  %v384 = vshll.u32 %v329, 16
  %v386 = vrot.slane %v384, 1
  %v387 = vor.u32 %v382, %v386
  %v389 = vshrl.u32 %v330, 16
  %v391 = vshll.u32 %v330, 16
  %v393 = vrot.slane %v391, 1
  %v394 = vor.u32 %v389, %v393
  %v396 = vshrl.u32 %v331, 16
  %v398 = vshll.u32 %v331, 16
  %v400 = vrot.slane %v398, 1
  %v401 = vor.u32 %v396, %v400
  %v403 = vshrl.u32 %v332, 16
  %v405 = vshll.u32 %v332, 16
  %v407 = vrot.slane %v405, 1
  %v408 = vor.u32 %v403, %v407
  %v410 = vshrl.u32 %v333, 16
  %v412 = vshll.u32 %v333, 16
  %v414 = vrot.slane %v412, 1
  %v415 = vor.u32 %v410, %v414
  %v417 = vshrl.u32 %v334, 16
  %v419 = vshll.u32 %v334, 16
  %v421 = vrot.slane %v419, 1
  %v422 = vor.u32 %v417, %v421
  %v424 = vshrl.u32 %v335, 16
  %v426 = vshll.u32 %v335, 16
  %v428 = vrot.slane %v426, 1
  %v429 = vor.u32 %v424, %v428
  %v431 = vshrl.u32 %v336, 16
  %v433 = vshll.u32 %v336, 16
  %v435 = vrot.slane %v433, 1
  %v436 = vor.u32 %v431, %v435
  %v438 = vshrl.u32 %v337, 16
  %v440 = vshll.u32 %v337, 16
  %v442 = vrot.slane %v440, 1
  %v443 = vor.u32 %v438, %v442
  %v445 = vshrl.u32 %v338, 16
  %v447 = vshll.u32 %v338, 16
  %v449 = vrot.slane %v447, 1
  %v450 = vor.u32 %v445, %v449
  %451 = vrot.lane.b32.xlu0 %v345, 8
  %v452 = vpop.permute.xlu0 %451
  %453 = vrot.lane.b32.xlu0 %v352, 8
  %v454 = vpop.permute.xlu0 %453
  %455 = vrot.lane.b32.xlu0 %v359, 8
  %v456 = vpop.permute.xlu0 %455
  %457 = vrot.lane.b32.xlu0 %v366, 8
  %v458 = vpop.permute.xlu0 %457
  %459 = vrot.lane.b32.xlu0 %v373, 8
  %v460 = vpop.permute.xlu0 %459
  %461 = vrot.lane.b32.xlu0 %v380, 8
  %v462 = vpop.permute.xlu0 %461
  %463 = vrot.lane.b32.xlu0 %v387, 8
  %v464 = vpop.permute.xlu0 %463
  %465 = vrot.lane.b32.xlu0 %v394, 8
  %v466 = vpop.permute.xlu0 %465
  %467 = vrot.lane.b32.xlu0 %v401, 8
  %v468 = vpop.permute.xlu0 %467
  %469 = vrot.lane.b32.xlu0 %v408, 8
  %v470 = vpop.permute.xlu0 %469
  %471 = vrot.lane.b32.xlu0 %v415, 8
  %v472 = vpop.permute.xlu0 %471
  %473 = vrot.lane.b32.xlu0 %v422, 8
  %v474 = vpop.permute.xlu0 %473
  %475 = vrot.lane.b32.xlu0 %v429, 8
  %v476 = vpop.permute.xlu0 %475
  %477 = vrot.lane.b32.xlu0 %v436, 8
  %v478 = vpop.permute.xlu0 %477
  %479 = vrot.lane.b32.xlu0 %v443, 8
  %v480 = vpop.permute.xlu0 %479
  %481 = vrot.lane.b32.xlu0 %v450, 8
  %v482 = vpop.permute.xlu0 %481
  %v499 = vunpack.c.l.b16 %v73
  %v500 = vunpack.c.l.b16 %v74
  %v501 = vunpack.c.l.b16 %v75
  %v502 = vunpack.c.l.b16 %v76
  %v503 = vunpack.c.l.b16 %v77
  %v504 = vunpack.c.l.b16 %v78
  %v505 = vunpack.c.l.b16 %v79
  %v506 = vunpack.c.l.b16 %v80
  %v507 = vunpack.c.l.b16 %v81
  %v508 = vunpack.c.l.b16 %v82
  %v509 = vunpack.c.l.b16 %v83
  %v510 = vunpack.c.l.b16 %v84
  %v511 = vunpack.c.l.b16 %v85
  %v512 = vunpack.c.l.b16 %v86
  %v513 = vunpack.c.l.b16 %v87
  %v514 = vunpack.c.l.b16 %v88
  %v515 = vpack.c.b16 %v499, %v499
  %v516 = vpack.c.b16 %v500, %v500
  %v517 = vpack.c.b16 %v501, %v501
  %v518 = vpack.c.b16 %v502, %v502
  %v519 = vpack.c.b16 %v503, %v503
  %v520 = vpack.c.b16 %v504, %v504
  %v521 = vpack.c.b16 %v505, %v505
  %v522 = vpack.c.b16 %v506, %v506
  %v523 = vpack.c.b16 %v507, %v507
  %v524 = vpack.c.b16 %v508, %v508
  %v525 = vpack.c.b16 %v509, %v509
  %v526 = vpack.c.b16 %v510, %v510
  %v527 = vpack.c.b16 %v511, %v511
  %v528 = vpack.c.b16 %v512, %v512
  %v529 = vpack.c.b16 %v513, %v513
  %v530 = vpack.c.b16 %v514, %v514
  %531 = vrot.lane.b32.xlu0 %v515, 12
  %v532 = vpop.permute.xlu0 %531
  %533 = vrot.lane.b32.xlu0 %v516, 12
  %v534 = vpop.permute.xlu0 %533
  %535 = vrot.lane.b32.xlu0 %v517, 12
  %v536 = vpop.permute.xlu0 %535
  %537 = vrot.lane.b32.xlu0 %v518, 12
  %v538 = vpop.permute.xlu0 %537
  %539 = vrot.lane.b32.xlu0 %v519, 12
  %v540 = vpop.permute.xlu0 %539
  %541 = vrot.lane.b32.xlu0 %v520, 12
  %v542 = vpop.permute.xlu0 %541
  %543 = vrot.lane.b32.xlu0 %v521, 12
  %v544 = vpop.permute.xlu0 %543
  %545 = vrot.lane.b32.xlu0 %v522, 12
  %v546 = vpop.permute.xlu0 %545
  %547 = vrot.lane.b32.xlu0 %v523, 12
  %v548 = vpop.permute.xlu0 %547
  %549 = vrot.lane.b32.xlu0 %v524, 12
  %v550 = vpop.permute.xlu0 %549
  %551 = vrot.lane.b32.xlu0 %v525, 12
  %v552 = vpop.permute.xlu0 %551
  %553 = vrot.lane.b32.xlu0 %v526, 12
  %v554 = vpop.permute.xlu0 %553
  %555 = vrot.lane.b32.xlu0 %v527, 12
  %v556 = vpop.permute.xlu0 %555
  %557 = vrot.lane.b32.xlu0 %v528, 12
  %v558 = vpop.permute.xlu0 %557
  %559 = vrot.lane.b32.xlu0 %v529, 12
  %v560 = vpop.permute.xlu0 %559
  %561 = vrot.lane.b32.xlu0 %v530, 12
  %v562 = vpop.permute.xlu0 %561
  %v579 = vunpack.c.l.b16 %v92
  %v580 = vunpack.c.l.b16 %v93
  %v581 = vunpack.c.l.b16 %v94
  %v582 = vunpack.c.l.b16 %v95
  %v583 = vunpack.c.l.b16 %v96
  %v584 = vunpack.c.l.b16 %v97
  %v585 = vunpack.c.l.b16 %v98
  %v586 = vunpack.c.l.b16 %v99
  %v587 = vunpack.c.l.b16 %v100
  %v588 = vunpack.c.l.b16 %v101
  %v589 = vunpack.c.l.b16 %v102
  %v590 = vunpack.c.l.b16 %v103
  %v591 = vunpack.c.l.b16 %v104
  %v592 = vunpack.c.l.b16 %v105
  %v593 = vunpack.c.l.b16 %v106
  %v594 = vunpack.c.l.b16 %v107
  %v595 = vpack.c.b16 %v579, %v579
  %v596 = vpack.c.b16 %v580, %v580
  %v597 = vpack.c.b16 %v581, %v581
  %v598 = vpack.c.b16 %v582, %v582
  %v599 = vpack.c.b16 %v583, %v583
  %v600 = vpack.c.b16 %v584, %v584
  %v601 = vpack.c.b16 %v585, %v585
  %v602 = vpack.c.b16 %v586, %v586
  %v603 = vpack.c.b16 %v587, %v587
  %v604 = vpack.c.b16 %v588, %v588
  %v605 = vpack.c.b16 %v589, %v589
  %v606 = vpack.c.b16 %v590, %v590
  %v607 = vpack.c.b16 %v591, %v591
  %v608 = vpack.c.b16 %v592, %v592
  %v609 = vpack.c.b16 %v593, %v593
  %v610 = vpack.c.b16 %v594, %v594
  %611 = vrot.lane.b32.xlu0 %v595, 16
  %v612 = vpop.permute.xlu0 %611
  %613 = vrot.lane.b32.xlu0 %v596, 16
  %v614 = vpop.permute.xlu0 %613
  %615 = vrot.lane.b32.xlu0 %v597, 16
  %v616 = vpop.permute.xlu0 %615
  %617 = vrot.lane.b32.xlu0 %v598, 16
  %v618 = vpop.permute.xlu0 %617
  %619 = vrot.lane.b32.xlu0 %v599, 16
  %v620 = vpop.permute.xlu0 %619
  %621 = vrot.lane.b32.xlu0 %v600, 16
  %v622 = vpop.permute.xlu0 %621
  %623 = vrot.lane.b32.xlu0 %v601, 16
  %v624 = vpop.permute.xlu0 %623
  %625 = vrot.lane.b32.xlu0 %v602, 16
  %v626 = vpop.permute.xlu0 %625
  %627 = vrot.lane.b32.xlu0 %v603, 16
  %v628 = vpop.permute.xlu0 %627
  %629 = vrot.lane.b32.xlu0 %v604, 16
  %v630 = vpop.permute.xlu0 %629
  %631 = vrot.lane.b32.xlu0 %v605, 16
  %v632 = vpop.permute.xlu0 %631
  %633 = vrot.lane.b32.xlu0 %v606, 16
  %v634 = vpop.permute.xlu0 %633
  %635 = vrot.lane.b32.xlu0 %v607, 16
  %v636 = vpop.permute.xlu0 %635
  %637 = vrot.lane.b32.xlu0 %v608, 16
  %v638 = vpop.permute.xlu0 %637
  %639 = vrot.lane.b32.xlu0 %v609, 16
  %v640 = vpop.permute.xlu0 %639
  %641 = vrot.lane.b32.xlu0 %v610, 16
  %v642 = vpop.permute.xlu0 %641
  %v659 = vunpack.c.l.b16 %v108
  %v660 = vunpack.c.l.b16 %v109
  %v661 = vunpack.c.l.b16 %v110
  %v662 = vunpack.c.l.b16 %v111
  %v663 = vunpack.c.l.b16 %v112
  %v664 = vunpack.c.l.b16 %v113
  %v665 = vunpack.c.l.b16 %v114
  %v666 = vunpack.c.l.b16 %v115
  %v667 = vunpack.c.l.b16 %v116
  %v668 = vunpack.c.l.b16 %v117
  %v669 = vunpack.c.l.b16 %v118
  %v670 = vunpack.c.l.b16 %v119
  %v671 = vunpack.c.l.b16 %v120
  %v672 = vunpack.c.l.b16 %v121
  %v673 = vunpack.c.l.b16 %v122
  %v674 = vunpack.c.l.b16 %v123
  %v675 = vpack.c.b16 %v659, %v499
  %v676 = vpack.c.b16 %v660, %v500
  %v677 = vpack.c.b16 %v661, %v501
  %v678 = vpack.c.b16 %v662, %v502
  %v679 = vpack.c.b16 %v663, %v503
  %v680 = vpack.c.b16 %v664, %v504
  %v681 = vpack.c.b16 %v665, %v505
  %v682 = vpack.c.b16 %v666, %v506
  %v683 = vpack.c.b16 %v667, %v507
  %v684 = vpack.c.b16 %v668, %v508
  %v685 = vpack.c.b16 %v669, %v509
  %v686 = vpack.c.b16 %v670, %v510
  %v687 = vpack.c.b16 %v671, %v511
  %v688 = vpack.c.b16 %v672, %v512
  %v689 = vpack.c.b16 %v673, %v513
  %v690 = vpack.c.b16 %v674, %v514
  %v692 = vshrl.u32 %v675, 16
  %v694 = vshll.u32 %v675, 16
  %v696 = vrot.slane %v694, 1
  %v697 = vor.u32 %v692, %v696
  %v699 = vshrl.u32 %v676, 16
  %v701 = vshll.u32 %v676, 16
  %v703 = vrot.slane %v701, 1
  %v704 = vor.u32 %v699, %v703
  %v706 = vshrl.u32 %v677, 16
  %v708 = vshll.u32 %v677, 16
  %v710 = vrot.slane %v708, 1
  %v711 = vor.u32 %v706, %v710
  %v713 = vshrl.u32 %v678, 16
  %v715 = vshll.u32 %v678, 16
  %v717 = vrot.slane %v715, 1
  %v718 = vor.u32 %v713, %v717
  %v720 = vshrl.u32 %v679, 16
  %v722 = vshll.u32 %v679, 16
  %v724 = vrot.slane %v722, 1
  %v725 = vor.u32 %v720, %v724
  %v727 = vshrl.u32 %v680, 16
  %v729 = vshll.u32 %v680, 16
  %v731 = vrot.slane %v729, 1
  %v732 = vor.u32 %v727, %v731
  %v734 = vshrl.u32 %v681, 16
  %v736 = vshll.u32 %v681, 16
  %v738 = vrot.slane %v736, 1
  %v739 = vor.u32 %v734, %v738
  %v741 = vshrl.u32 %v682, 16
  %v743 = vshll.u32 %v682, 16
  %v745 = vrot.slane %v743, 1
  %v746 = vor.u32 %v741, %v745
  %v748 = vshrl.u32 %v683, 16
  %v750 = vshll.u32 %v683, 16
  %v752 = vrot.slane %v750, 1
  %v753 = vor.u32 %v748, %v752
  %v755 = vshrl.u32 %v684, 16
  %v757 = vshll.u32 %v684, 16
  %v759 = vrot.slane %v757, 1
  %v760 = vor.u32 %v755, %v759
  %v762 = vshrl.u32 %v685, 16
  %v764 = vshll.u32 %v685, 16
  %v766 = vrot.slane %v764, 1
  %v767 = vor.u32 %v762, %v766
  %v769 = vshrl.u32 %v686, 16
  %v771 = vshll.u32 %v686, 16
  %v773 = vrot.slane %v771, 1
  %v774 = vor.u32 %v769, %v773
  %v776 = vshrl.u32 %v687, 16
  %v778 = vshll.u32 %v687, 16
  %v780 = vrot.slane %v778, 1
  %v781 = vor.u32 %v776, %v780
  %v783 = vshrl.u32 %v688, 16
  %v785 = vshll.u32 %v688, 16
  %v787 = vrot.slane %v785, 1
  %v788 = vor.u32 %v783, %v787
  %v790 = vshrl.u32 %v689, 16
  %v792 = vshll.u32 %v689, 16
  %v794 = vrot.slane %v792, 1
  %v795 = vor.u32 %v790, %v794
  %v797 = vshrl.u32 %v690, 16
  %v799 = vshll.u32 %v690, 16
  %v801 = vrot.slane %v799, 1
  %v802 = vor.u32 %v797, %v801
  %803 = vrot.lane.b32.xlu0 %v697, 20
  %v804 = vpop.permute.xlu0 %803
  %805 = vrot.lane.b32.xlu0 %v704, 20
  %v806 = vpop.permute.xlu0 %805
  %807 = vrot.lane.b32.xlu0 %v711, 20
  %v808 = vpop.permute.xlu0 %807
  %809 = vrot.lane.b32.xlu0 %v718, 20
  %v810 = vpop.permute.xlu0 %809
  %811 = vrot.lane.b32.xlu0 %v725, 20
  %v812 = vpop.permute.xlu0 %811
  %813 = vrot.lane.b32.xlu0 %v732, 20
  %v814 = vpop.permute.xlu0 %813
  %815 = vrot.lane.b32.xlu0 %v739, 20
  %v816 = vpop.permute.xlu0 %815
  %817 = vrot.lane.b32.xlu0 %v746, 20
  %v818 = vpop.permute.xlu0 %817
  %819 = vrot.lane.b32.xlu0 %v753, 20
  %v820 = vpop.permute.xlu0 %819
  %821 = vrot.lane.b32.xlu0 %v760, 20
  %v822 = vpop.permute.xlu0 %821
  %823 = vrot.lane.b32.xlu0 %v767, 20
  %v824 = vpop.permute.xlu0 %823
  %825 = vrot.lane.b32.xlu0 %v774, 20
  %v826 = vpop.permute.xlu0 %825
  %827 = vrot.lane.b32.xlu0 %v781, 20
  %v828 = vpop.permute.xlu0 %827
  %829 = vrot.lane.b32.xlu0 %v788, 20
  %v830 = vpop.permute.xlu0 %829
  %831 = vrot.lane.b32.xlu0 %v795, 20
  %v832 = vpop.permute.xlu0 %831
  %833 = vrot.lane.b32.xlu0 %v802, 20
  %v834 = vpop.permute.xlu0 %833
  %v851 = vunpack.c.l.b16 %v128
  %v852 = vunpack.c.l.b16 %v129
  %v853 = vunpack.c.l.b16 %v130
  %v854 = vunpack.c.l.b16 %v131
  %v855 = vunpack.c.l.b16 %v132
  %v856 = vunpack.c.l.b16 %v133
  %v857 = vunpack.c.l.b16 %v134
  %v858 = vunpack.c.l.b16 %v135
  %v859 = vunpack.c.l.b16 %v136
  %v860 = vunpack.c.l.b16 %v137
  %v861 = vunpack.c.l.b16 %v138
  %v862 = vunpack.c.l.b16 %v139
  %v863 = vunpack.c.l.b16 %v140
  %v864 = vunpack.c.l.b16 %v141
  %v865 = vunpack.c.l.b16 %v142
  %v866 = vunpack.c.l.b16 %v143
  %v867 = vpack.c.b16 %v851, %v851
  %v868 = vpack.c.b16 %v852, %v852
  %v869 = vpack.c.b16 %v853, %v853
  %v870 = vpack.c.b16 %v854, %v854
  %v871 = vpack.c.b16 %v855, %v855
  %v872 = vpack.c.b16 %v856, %v856
  %v873 = vpack.c.b16 %v857, %v857
  %v874 = vpack.c.b16 %v858, %v858
  %v875 = vpack.c.b16 %v859, %v859
  %v876 = vpack.c.b16 %v860, %v860
  %v877 = vpack.c.b16 %v861, %v861
  %v878 = vpack.c.b16 %v862, %v862
  %v879 = vpack.c.b16 %v863, %v863
  %v880 = vpack.c.b16 %v864, %v864
  %v881 = vpack.c.b16 %v865, %v865
  %v882 = vpack.c.b16 %v866, %v866
  %883 = vrot.lane.b32.xlu0 %v867, 24
  %v884 = vpop.permute.xlu0 %883
  %885 = vrot.lane.b32.xlu0 %v868, 24
  %v886 = vpop.permute.xlu0 %885
  %887 = vrot.lane.b32.xlu0 %v869, 24
  %v888 = vpop.permute.xlu0 %887
  %889 = vrot.lane.b32.xlu0 %v870, 24
  %v890 = vpop.permute.xlu0 %889
  %891 = vrot.lane.b32.xlu0 %v871, 24
  %v892 = vpop.permute.xlu0 %891
  %893 = vrot.lane.b32.xlu0 %v872, 24
  %v894 = vpop.permute.xlu0 %893
  %895 = vrot.lane.b32.xlu0 %v873, 24
  %v896 = vpop.permute.xlu0 %895
  %897 = vrot.lane.b32.xlu0 %v874, 24
  %v898 = vpop.permute.xlu0 %897
  %899 = vrot.lane.b32.xlu0 %v875, 24
  %v900 = vpop.permute.xlu0 %899
  %901 = vrot.lane.b32.xlu0 %v876, 24
  %v902 = vpop.permute.xlu0 %901
  %903 = vrot.lane.b32.xlu0 %v877, 24
  %v904 = vpop.permute.xlu0 %903
  %905 = vrot.lane.b32.xlu0 %v878, 24
  %v906 = vpop.permute.xlu0 %905
  %907 = vrot.lane.b32.xlu0 %v879, 24
  %v908 = vpop.permute.xlu0 %907
  %909 = vrot.lane.b32.xlu0 %v880, 24
  %v910 = vpop.permute.xlu0 %909
  %911 = vrot.lane.b32.xlu0 %v881, 24
  %v912 = vpop.permute.xlu0 %911
  %913 = vrot.lane.b32.xlu0 %v882, 24
  %v914 = vpop.permute.xlu0 %913
  %v931 = vunpack.c.l.b16 %v147
  %v932 = vunpack.c.l.b16 %v148
  %v933 = vunpack.c.l.b16 %v149
  %v934 = vunpack.c.l.b16 %v150
  %v935 = vunpack.c.l.b16 %v151
  %v936 = vunpack.c.l.b16 %v152
  %v937 = vunpack.c.l.b16 %v153
  %v938 = vunpack.c.l.b16 %v154
  %v939 = vunpack.c.l.b16 %v155
  %v940 = vunpack.c.l.b16 %v156
  %v941 = vunpack.c.l.b16 %v157
  %v942 = vunpack.c.l.b16 %v158
  %v943 = vunpack.c.l.b16 %v159
  %v944 = vunpack.c.l.b16 %v160
  %v945 = vunpack.c.l.b16 %v161
  %v946 = vunpack.c.l.b16 %v162
  %v947 = vpack.c.b16 %v931, %v931
  %v948 = vpack.c.b16 %v932, %v932
  %v949 = vpack.c.b16 %v933, %v933
  %v950 = vpack.c.b16 %v934, %v934
  %v951 = vpack.c.b16 %v935, %v935
  %v952 = vpack.c.b16 %v936, %v936
  %v953 = vpack.c.b16 %v937, %v937
  %v954 = vpack.c.b16 %v938, %v938
  %v955 = vpack.c.b16 %v939, %v939
  %v956 = vpack.c.b16 %v940, %v940
  %v957 = vpack.c.b16 %v941, %v941
  %v958 = vpack.c.b16 %v942, %v942
  %v959 = vpack.c.b16 %v943, %v943
  %v960 = vpack.c.b16 %v944, %v944
  %v961 = vpack.c.b16 %v945, %v945
  %v962 = vpack.c.b16 %v946, %v946
  %963 = vrot.lane.b32.xlu0 %v947, 28
  %v964 = vpop.permute.xlu0 %963
  %965 = vrot.lane.b32.xlu0 %v948, 28
  %v966 = vpop.permute.xlu0 %965
  %967 = vrot.lane.b32.xlu0 %v949, 28
  %v968 = vpop.permute.xlu0 %967
  %969 = vrot.lane.b32.xlu0 %v950, 28
  %v970 = vpop.permute.xlu0 %969
  %971 = vrot.lane.b32.xlu0 %v951, 28
  %v972 = vpop.permute.xlu0 %971
  %973 = vrot.lane.b32.xlu0 %v952, 28
  %v974 = vpop.permute.xlu0 %973
  %975 = vrot.lane.b32.xlu0 %v953, 28
  %v976 = vpop.permute.xlu0 %975
  %977 = vrot.lane.b32.xlu0 %v954, 28
  %v978 = vpop.permute.xlu0 %977
  %979 = vrot.lane.b32.xlu0 %v955, 28
  %v980 = vpop.permute.xlu0 %979
  %981 = vrot.lane.b32.xlu0 %v956, 28
  %v982 = vpop.permute.xlu0 %981
  %983 = vrot.lane.b32.xlu0 %v957, 28
  %v984 = vpop.permute.xlu0 %983
  %985 = vrot.lane.b32.xlu0 %v958, 28
  %v986 = vpop.permute.xlu0 %985
  %987 = vrot.lane.b32.xlu0 %v959, 28
  %v988 = vpop.permute.xlu0 %987
  %989 = vrot.lane.b32.xlu0 %v960, 28
  %v990 = vpop.permute.xlu0 %989
  %991 = vrot.lane.b32.xlu0 %v961, 28
  %v992 = vpop.permute.xlu0 %991
  %993 = vrot.lane.b32.xlu0 %v962, 28
  %v994 = vpop.permute.xlu0 %993
  %v1011 = vunpack.c.l.b16 %v163
  %v1012 = vunpack.c.l.b16 %v164
  %v1013 = vunpack.c.l.b16 %v165
  %v1014 = vunpack.c.l.b16 %v166
  %v1015 = vunpack.c.l.b16 %v167
  %v1016 = vunpack.c.l.b16 %v168
  %v1017 = vunpack.c.l.b16 %v169
  %v1018 = vunpack.c.l.b16 %v170
  %v1019 = vunpack.c.l.b16 %v171
  %v1020 = vunpack.c.l.b16 %v172
  %v1021 = vunpack.c.l.b16 %v173
  %v1022 = vunpack.c.l.b16 %v174
  %v1023 = vunpack.c.l.b16 %v175
  %v1024 = vunpack.c.l.b16 %v176
  %v1025 = vunpack.c.l.b16 %v177
  %v1026 = vunpack.c.l.b16 %v178
  %v1027 = vpack.c.b16 %v1011, %v851
  %v1028 = vpack.c.b16 %v1012, %v852
  %v1029 = vpack.c.b16 %v1013, %v853
  %v1030 = vpack.c.b16 %v1014, %v854
  %v1031 = vpack.c.b16 %v1015, %v855
  %v1032 = vpack.c.b16 %v1016, %v856
  %v1033 = vpack.c.b16 %v1017, %v857
  %v1034 = vpack.c.b16 %v1018, %v858
  %v1035 = vpack.c.b16 %v1019, %v859
  %v1036 = vpack.c.b16 %v1020, %v860
  %v1037 = vpack.c.b16 %v1021, %v861
  %v1038 = vpack.c.b16 %v1022, %v862
  %v1039 = vpack.c.b16 %v1023, %v863
  %v1040 = vpack.c.b16 %v1024, %v864
  %v1041 = vpack.c.b16 %v1025, %v865
  %v1042 = vpack.c.b16 %v1026, %v866
  %v1044 = vshrl.u32 %v1027, 16
  %v1046 = vshll.u32 %v1027, 16
  %v1048 = vrot.slane %v1046, 1
  %v1049 = vor.u32 %v1044, %v1048
  %v1051 = vshrl.u32 %v1028, 16
  %v1053 = vshll.u32 %v1028, 16
  %v1055 = vrot.slane %v1053, 1
  %v1056 = vor.u32 %v1051, %v1055
  %v1058 = vshrl.u32 %v1029, 16
  %v1060 = vshll.u32 %v1029, 16
  %v1062 = vrot.slane %v1060, 1
  %v1063 = vor.u32 %v1058, %v1062
  %v1065 = vshrl.u32 %v1030, 16
  %v1067 = vshll.u32 %v1030, 16
  %v1069 = vrot.slane %v1067, 1
  %v1070 = vor.u32 %v1065, %v1069
  %v1072 = vshrl.u32 %v1031, 16
  %v1074 = vshll.u32 %v1031, 16
  %v1076 = vrot.slane %v1074, 1
  %v1077 = vor.u32 %v1072, %v1076
  %v1079 = vshrl.u32 %v1032, 16
  %v1081 = vshll.u32 %v1032, 16
  %v1083 = vrot.slane %v1081, 1
  %v1084 = vor.u32 %v1079, %v1083
  %v1086 = vshrl.u32 %v1033, 16
  %v1088 = vshll.u32 %v1033, 16
  %v1090 = vrot.slane %v1088, 1
  %v1091 = vor.u32 %v1086, %v1090
  %v1093 = vshrl.u32 %v1034, 16
  %v1095 = vshll.u32 %v1034, 16
  %v1097 = vrot.slane %v1095, 1
  %v1098 = vor.u32 %v1093, %v1097
  %v1100 = vshrl.u32 %v1035, 16
  %v1102 = vshll.u32 %v1035, 16
  %v1104 = vrot.slane %v1102, 1
  %v1105 = vor.u32 %v1100, %v1104
  %v1107 = vshrl.u32 %v1036, 16
  %v1109 = vshll.u32 %v1036, 16
  %v1111 = vrot.slane %v1109, 1
  %v1112 = vor.u32 %v1107, %v1111
  %v1114 = vshrl.u32 %v1037, 16
  %v1116 = vshll.u32 %v1037, 16
  %v1118 = vrot.slane %v1116, 1
  %v1119 = vor.u32 %v1114, %v1118
  %v1121 = vshrl.u32 %v1038, 16
  %v1123 = vshll.u32 %v1038, 16
  %v1125 = vrot.slane %v1123, 1
  %v1126 = vor.u32 %v1121, %v1125
  %v1128 = vshrl.u32 %v1039, 16
  %v1130 = vshll.u32 %v1039, 16
  %v1132 = vrot.slane %v1130, 1
  %v1133 = vor.u32 %v1128, %v1132
  %v1135 = vshrl.u32 %v1040, 16
  %v1137 = vshll.u32 %v1040, 16
  %v1139 = vrot.slane %v1137, 1
  %v1140 = vor.u32 %v1135, %v1139
  %v1142 = vshrl.u32 %v1041, 16
  %v1144 = vshll.u32 %v1041, 16
  %v1146 = vrot.slane %v1144, 1
  %v1147 = vor.u32 %v1142, %v1146
  %v1149 = vshrl.u32 %v1042, 16
  %v1151 = vshll.u32 %v1042, 16
  %v1153 = vrot.slane %v1151, 1
  %v1154 = vor.u32 %v1149, %v1153
  %1155 = vrot.lane.b32.xlu0 %v1049, 32
  %v1156 = vpop.permute.xlu0 %1155
  %1157 = vrot.lane.b32.xlu0 %v1056, 32
  %v1158 = vpop.permute.xlu0 %1157
  %1159 = vrot.lane.b32.xlu0 %v1063, 32
  %v1160 = vpop.permute.xlu0 %1159
  %1161 = vrot.lane.b32.xlu0 %v1070, 32
  %v1162 = vpop.permute.xlu0 %1161
  %1163 = vrot.lane.b32.xlu0 %v1077, 32
  %v1164 = vpop.permute.xlu0 %1163
  %1165 = vrot.lane.b32.xlu0 %v1084, 32
  %v1166 = vpop.permute.xlu0 %1165
  %1167 = vrot.lane.b32.xlu0 %v1091, 32
  %v1168 = vpop.permute.xlu0 %1167
  %1169 = vrot.lane.b32.xlu0 %v1098, 32
  %v1170 = vpop.permute.xlu0 %1169
  %1171 = vrot.lane.b32.xlu0 %v1105, 32
  %v1172 = vpop.permute.xlu0 %1171
  %1173 = vrot.lane.b32.xlu0 %v1112, 32
  %v1174 = vpop.permute.xlu0 %1173
  %1175 = vrot.lane.b32.xlu0 %v1119, 32
  %v1176 = vpop.permute.xlu0 %1175
  %1177 = vrot.lane.b32.xlu0 %v1126, 32
  %v1178 = vpop.permute.xlu0 %1177
  %1179 = vrot.lane.b32.xlu0 %v1133, 32
  %v1180 = vpop.permute.xlu0 %1179
  %1181 = vrot.lane.b32.xlu0 %v1140, 32
  %v1182 = vpop.permute.xlu0 %1181
  %1183 = vrot.lane.b32.xlu0 %v1147, 32
  %v1184 = vpop.permute.xlu0 %1183
  %1185 = vrot.lane.b32.xlu0 %v1154, 32
  %v1186 = vpop.permute.xlu0 %1185
  %vm1187 = vcmask 31744
  %v1190 = vsel %vm1187, %v19, %v228
  %v1193 = vsel %vm1187, %v20, %v230
  %v1196 = vsel %vm1187, %v21, %v232
  %v1199 = vsel %vm1187, %v22, %v234
  %v1202 = vsel %vm1187, %v23, %v236
  %v1205 = vsel %vm1187, %v24, %v238
  %v1208 = vsel %vm1187, %v25, %v240
  %v1211 = vsel %vm1187, %v26, %v242
  %v1214 = vsel %vm1187, %v27, %v244
  %v1217 = vsel %vm1187, %v28, %v246
  %v1220 = vsel %vm1187, %v29, %v248
  %v1223 = vsel %vm1187, %v30, %v250
  %v1226 = vsel %vm1187, %v31, %v252
  %v1229 = vsel %vm1187, %v32, %v254
  %v1232 = vsel %vm1187, %v33, %v256
  %v1235 = vsel %vm1187, %v34, %v258
  %vm1236 = vcmask 64512
  %v1238 = vsel %vm1236, %v1190, %v452
  %v1240 = vsel %vm1236, %v1193, %v454
  %v1242 = vsel %vm1236, %v1196, %v456
  %v1244 = vsel %vm1236, %v1199, %v458
  %v1246 = vsel %vm1236, %v1202, %v460
  %v1248 = vsel %vm1236, %v1205, %v462
  %v1250 = vsel %vm1236, %v1208, %v464
  %v1252 = vsel %vm1236, %v1211, %v466
  %v1254 = vsel %vm1236, %v1214, %v468
  %v1256 = vsel %vm1236, %v1217, %v470
  %v1258 = vsel %vm1236, %v1220, %v472
  %v1260 = vsel %vm1236, %v1223, %v474
  %v1262 = vsel %vm1236, %v1226, %v476
  %v1264 = vsel %vm1236, %v1229, %v478
  %v1266 = vsel %vm1236, %v1232, %v480
  %v1268 = vsel %vm1236, %v1235, %v482
  %vm1269 = vcmask 97280
  %v1271 = vsel %vm1269, %v1238, %v532
  %v1273 = vsel %vm1269, %v1240, %v534
  %v1275 = vsel %vm1269, %v1242, %v536
  %v1277 = vsel %vm1269, %v1244, %v538
  %v1279 = vsel %vm1269, %v1246, %v540
  %v1281 = vsel %vm1269, %v1248, %v542
  %v1283 = vsel %vm1269, %v1250, %v544
  %v1285 = vsel %vm1269, %v1252, %v546
  %v1287 = vsel %vm1269, %v1254, %v548
  %v1289 = vsel %vm1269, %v1256, %v550
  %v1291 = vsel %vm1269, %v1258, %v552
  %v1293 = vsel %vm1269, %v1260, %v554
  %v1295 = vsel %vm1269, %v1262, %v556
  %v1297 = vsel %vm1269, %v1264, %v558
  %v1299 = vsel %vm1269, %v1266, %v560
  %v1301 = vsel %vm1269, %v1268, %v562
  %vm1302 = vcmask 130048
  %v1304 = vsel %vm1302, %v1271, %v612
  %v1306 = vsel %vm1302, %v1273, %v614
  %v1308 = vsel %vm1302, %v1275, %v616
  %v1310 = vsel %vm1302, %v1277, %v618
  %v1312 = vsel %vm1302, %v1279, %v620
  %v1314 = vsel %vm1302, %v1281, %v622
  %v1316 = vsel %vm1302, %v1283, %v624
  %v1318 = vsel %vm1302, %v1285, %v626
  %v1320 = vsel %vm1302, %v1287, %v628
  %v1322 = vsel %vm1302, %v1289, %v630
  %v1324 = vsel %vm1302, %v1291, %v632
  %v1326 = vsel %vm1302, %v1293, %v634
  %v1328 = vsel %vm1302, %v1295, %v636
  %v1330 = vsel %vm1302, %v1297, %v638
  %v1332 = vsel %vm1302, %v1299, %v640
  %v1334 = vsel %vm1302, %v1301, %v642
  %vm1335 = vcmask 162816
  %v1337 = vsel %vm1335, %v1304, %v804
  %v1339 = vsel %vm1335, %v1306, %v806
  %v1341 = vsel %vm1335, %v1308, %v808
  %v1343 = vsel %vm1335, %v1310, %v810
  %v1345 = vsel %vm1335, %v1312, %v812
  %v1347 = vsel %vm1335, %v1314, %v814
  %v1349 = vsel %vm1335, %v1316, %v816
  %v1351 = vsel %vm1335, %v1318, %v818
  %v1353 = vsel %vm1335, %v1320, %v820
  %v1355 = vsel %vm1335, %v1322, %v822
  %v1357 = vsel %vm1335, %v1324, %v824
  %v1359 = vsel %vm1335, %v1326, %v826
  %v1361 = vsel %vm1335, %v1328, %v828
  %v1363 = vsel %vm1335, %v1330, %v830
  %v1365 = vsel %vm1335, %v1332, %v832
  %v1367 = vsel %vm1335, %v1334, %v834
  %vm1368 = vcmask 195584
  %v1370 = vsel %vm1368, %v1337, %v884
  %v1372 = vsel %vm1368, %v1339, %v886
  %v1374 = vsel %vm1368, %v1341, %v888
  %v1376 = vsel %vm1368, %v1343, %v890
  %v1378 = vsel %vm1368, %v1345, %v892
  %v1380 = vsel %vm1368, %v1347, %v894
  %v1382 = vsel %vm1368, %v1349, %v896
  %v1384 = vsel %vm1368, %v1351, %v898
  %v1386 = vsel %vm1368, %v1353, %v900
  %v1388 = vsel %vm1368, %v1355, %v902
  %v1390 = vsel %vm1368, %v1357, %v904
  %v1392 = vsel %vm1368, %v1359, %v906
  %v1394 = vsel %vm1368, %v1361, %v908
  %v1396 = vsel %vm1368, %v1363, %v910
  %v1398 = vsel %vm1368, %v1365, %v912
  %v1400 = vsel %vm1368, %v1367, %v914
  %vm1401 = vcmask 228352
  %v1403 = vsel %vm1401, %v1370, %v964
  %v1405 = vsel %vm1401, %v1372, %v966
  %v1407 = vsel %vm1401, %v1374, %v968
  %v1409 = vsel %vm1401, %v1376, %v970
  %v1411 = vsel %vm1401, %v1378, %v972
  %v1413 = vsel %vm1401, %v1380, %v974
  %v1415 = vsel %vm1401, %v1382, %v976
  %v1417 = vsel %vm1401, %v1384, %v978
  %v1419 = vsel %vm1401, %v1386, %v980
  %v1421 = vsel %vm1401, %v1388, %v982
  %v1423 = vsel %vm1401, %v1390, %v984
  %v1425 = vsel %vm1401, %v1392, %v986
  %v1427 = vsel %vm1401, %v1394, %v988
  %v1429 = vsel %vm1401, %v1396, %v990
  %v1431 = vsel %vm1401, %v1398, %v992
  %v1433 = vsel %vm1401, %v1400, %v994
  %vm1434 = vcmask 261120
  %v1436 = vsel %vm1434, %v1403, %v1156
  %v1438 = vsel %vm1434, %v1405, %v1158
  %v1440 = vsel %vm1434, %v1407, %v1160
  %v1442 = vsel %vm1434, %v1409, %v1162
  %v1444 = vsel %vm1434, %v1411, %v1164
  %v1446 = vsel %vm1434, %v1413, %v1166
  %v1448 = vsel %vm1434, %v1415, %v1168
  %v1450 = vsel %vm1434, %v1417, %v1170
  %v1452 = vsel %vm1434, %v1419, %v1172
  %v1454 = vsel %vm1434, %v1421, %v1174
  %v1456 = vsel %vm1434, %v1423, %v1176
  %v1458 = vsel %vm1434, %v1425, %v1178
  %v1460 = vsel %vm1434, %v1427, %v1180
  %v1462 = vsel %vm1434, %v1429, %v1182
  %v1464 = vsel %vm1434, %v1431, %v1184
  %v1466 = vsel %vm1434, %v1433, %v1186
  %v1467 = vld [vmem:[%s1] sm:$0xf]
  %v1468 = vld [vmem:[%s1 + $0x4] sm:$0xf]
  %v1469 = vld [vmem:[%s1 + $0x8] sm:$0xf]
  %v1470 = vld [vmem:[%s1 + $0xc] sm:$0xf]
  %v1471 = vld [vmem:[%s1 + $0x10] sm:$0x3]
  %v1488 = vunpack.c.l.b16 %v1436
  %v1489 = vunpack.c.l.b16 %v1438
  %v1490 = vunpack.c.l.b16 %v1440
  %v1491 = vunpack.c.l.b16 %v1442
  %v1492 = vunpack.c.l.b16 %v1444
  %v1493 = vunpack.c.l.b16 %v1446
  %v1494 = vunpack.c.l.b16 %v1448
  %v1495 = vunpack.c.l.b16 %v1450
  %v1496 = vunpack.c.l.b16 %v1452
  %v1497 = vunpack.c.l.b16 %v1454
  %v1498 = vunpack.c.l.b16 %v1456
  %v1499 = vunpack.c.l.b16 %v1458
  %v1500 = vunpack.c.l.b16 %v1460
  %v1501 = vunpack.c.l.b16 %v1462
  %v1502 = vunpack.c.l.b16 %v1464
  %v1503 = vunpack.c.l.b16 %v1466
  %v1504 = vpack.c.b16 %v1489, %v1488
  %v1505 = vpack.c.b16 %v1491, %v1490
  %v1506 = vpack.c.b16 %v1493, %v1492
  %v1507 = vpack.c.b16 %v1495, %v1494
  %v1508 = vpack.c.b16 %v1497, %v1496
  %v1509 = vpack.c.b16 %v1499, %v1498
  %v1510 = vpack.c.b16 %v1501, %v1500
  %v1511 = vpack.c.b16 %v1503, %v1502
  %v1517 = vunpack.c.l.b16 %v1467
  %v1518 = vunpack.c.l.b16 %v1468
  %v1519 = vunpack.c.l.b16 %v1469
  %v1520 = vunpack.c.l.b16 %v1470
  %v1521 = vunpack.c.l.b16 %v1471
  %v1522 = vpack.c.b16 %v1518, %v1517
  %v1523 = vpack.c.b16 %v1520, %v1519
  %v1524 = vpack.c.b16 %v1521, %v1521
  %vm1527 = vcmask 293888
  %v1529 = vsel %vm1527, %v1504, 0
  %v1532 = vsel %vm1527, %v1505, 0
  %v1535 = vsel %vm1527, %v1506, 0
  %v1538 = vsel %vm1527, %v1507, 0
  %v1541 = vsel %vm1527, %v1508, 0
  %v1544 = vsel %vm1527, %v1509, 0
  %v1547 = vsel %vm1527, %v1510, 0
  %v1550 = vsel %vm1527, %v1511, 0
  %vm1552 = vcmask 1041408
  %v1554 = vsel %vm1552, %v1524, 0
  %1556 = vmatprep.subr.bf16.mxu0 0
  %1557 = vmatpush1.bf16.msra.mxu0 %v1522
  %1558 = vmatprep.subr.bf16.mxu0 0
  %1559 = vmatpush1.bf16.msra.mxu0 %v1523
  %1560 = vmatprep.subr.bf16.mxu0 0
  %1561 = vmatpush1.bf16.msra.mxu0 %v1554
  %1562 = vmatprep.subr.bf16.mxu0 0
  %1563 = vmatpush1.bf16.msra.mxu0 0
  %1564 = vmatprep.subr.bf16.mxu0 0
  %1565 = vmatpush1.bf16.msra.mxu0 0
  %1566 = vmatprep.subr.bf16.mxu0 0
  %1567 = vmatpush1.bf16.msra.mxu0 0
  %1568 = vmatprep.subr.bf16.mxu0 0
  %1569 = vmatpush1.bf16.msra.mxu0 0
  %1570 = vmatprep.subr.bf16.mxu0 0
  %1571 = vmatpush1.bf16.msra.mxu0 0
  %1572 = vmatprep.subr.bf16.mxu0 0
  %1573 = vmatpush1.bf16.msra.mxu0 0
  %1574 = vmatprep.subr.bf16.mxu0 0
  %1575 = vmatpush1.bf16.msra.mxu0 0
  %1576 = vmatprep.subr.bf16.mxu0 0
  %1577 = vmatpush1.bf16.msra.mxu0 0
  %1578 = vmatprep.subr.bf16.mxu0 0
  %1579 = vmatpush1.bf16.msra.mxu0 0
  %1580 = vmatprep.subr.bf16.mxu0 0
  %1581 = vmatpush1.bf16.msra.mxu0 0
  %1582 = vmatprep.subr.bf16.mxu0 0
  %1583 = vmatpush1.bf16.msra.mxu0 0
  %1584 = vmatprep.subr.bf16.mxu0 0
  %1585 = vmatpush1.bf16.msra.mxu0 0
  %1586 = vmatprep.subr.bf16.mxu0 0
  %1587 = vmatpush1.bf16.msra.mxu0 0
  %1588 = vmatprep.mubr.bf16.mxu0 0
  %1589 = vmatmul.mubr.bf16.gmra.mrb[0].mxu0 %v1529
  %v1590 = vpop.f32.mrb[0].mxu0
  %v1591 = vadd.f32 0.0, %v1590
  %v1592 = vpop.f32.mrb[0].mxu0
  %v1593 = vpop.f32.mrb[0].mxu0
  %v1594 = vadd.f32 0.0, %v1593
  %v1595 = vpop.f32.mrb[0].mxu0
  %1596 = vmatprep.mubr.bf16.mxu0 0
  %1597 = vmatmul.mubr.bf16.gmra.mrb[0].mxu0 %v1532
  %v1598 = vpop.f32.mrb[0].mxu0
  %v1599 = vadd.f32 0.0, %v1598
  %v1600 = vpop.f32.mrb[0].mxu0
  %v1601 = vpop.f32.mrb[0].mxu0
  %v1602 = vadd.f32 0.0, %v1601
  %v1603 = vpop.f32.mrb[0].mxu0
  %1604 = vmatprep.mubr.bf16.mxu0 0
  %1605 = vmatmul.mubr.bf16.gmra.mrb[0].mxu0 %v1535
  %v1606 = vpop.f32.mrb[0].mxu0
  %v1607 = vadd.f32 0.0, %v1606
  %v1608 = vpop.f32.mrb[0].mxu0
  %v1609 = vpop.f32.mrb[0].mxu0
  %v1610 = vadd.f32 0.0, %v1609
  %v1611 = vpop.f32.mrb[0].mxu0
  %1612 = vmatprep.mubr.bf16.mxu0 0
  %1613 = vmatmul.mubr.bf16.gmra.mrb[0].mxu0 %v1538
  %v1614 = vpop.f32.mrb[0].mxu0
  %v1615 = vadd.f32 0.0, %v1614
  %v1616 = vpop.f32.mrb[0].mxu0
  %v1617 = vpop.f32.mrb[0].mxu0
  %v1618 = vadd.f32 0.0, %v1617
  %v1619 = vpop.f32.mrb[0].mxu0
  %1620 = vmatprep.mubr.bf16.mxu0 0
  %1621 = vmatmul.mubr.bf16.gmra.mrb[0].mxu0 %v1541
  %v1622 = vpop.f32.mrb[0].mxu0
  %v1623 = vadd.f32 0.0, %v1622
  %v1624 = vpop.f32.mrb[0].mxu0
  %v1625 = vpop.f32.mrb[0].mxu0
  %v1626 = vadd.f32 0.0, %v1625
  %v1627 = vpop.f32.mrb[0].mxu0
  %1628 = vmatprep.mubr.bf16.mxu0 0
  %1629 = vmatmul.mubr.bf16.gmra.mrb[0].mxu0 %v1544
  %v1630 = vpop.f32.mrb[0].mxu0
  %v1631 = vadd.f32 0.0, %v1630
  %v1632 = vpop.f32.mrb[0].mxu0
  %v1633 = vpop.f32.mrb[0].mxu0
  %v1634 = vadd.f32 0.0, %v1633
  %v1635 = vpop.f32.mrb[0].mxu0
  %1636 = vmatprep.mubr.bf16.mxu0 0
  %1637 = vmatmul.mubr.bf16.gmra.mrb[0].mxu0 %v1547
  %v1638 = vpop.f32.mrb[0].mxu0
  %v1639 = vadd.f32 0.0, %v1638
  %v1640 = vpop.f32.mrb[0].mxu0
  %v1641 = vpop.f32.mrb[0].mxu0
  %v1642 = vadd.f32 0.0, %v1641
  %v1643 = vpop.f32.mrb[0].mxu0
  %1644 = vmatprep.mubr.bf16.mxu0 0
  %1645 = vmatmul.mubr.bf16.gmra.mrb[0].mxu0 %v1550
  %v1646 = vpop.f32.mrb[0].mxu0
  %v1647 = vadd.f32 0.0, %v1646
  %v1648 = vpop.f32.mrb[0].mxu0
  %v1649 = vpop.f32.mrb[0].mxu0
  %v1650 = vadd.f32 0.0, %v1649
  %v1651 = vpop.f32.mrb[0].mxu0
  %1652 = vdwg.mxu0
  %v1653 = vld [vmem:[%s2] sm:$0x1]
  %v1654 = vlaneseq
  %v1655 = vshrl.u32 %v1654, 7
  %v1656 = vsub.s32 0, %v1655
  %v1657 = vrot.slane %v1653, %v1656
  %v1658 = vmul.f32 %v1591, %v1657
  %v1659 = vmul.f32 %v1594, %v1657
  %v1660 = vmul.f32 %v1599, %v1657
  %v1661 = vmul.f32 %v1602, %v1657
  %v1662 = vmul.f32 %v1607, %v1657
  %v1663 = vmul.f32 %v1610, %v1657
  %v1664 = vmul.f32 %v1615, %v1657
  %v1665 = vmul.f32 %v1618, %v1657
  %v1666 = vmul.f32 %v1623, %v1657
  %v1667 = vmul.f32 %v1626, %v1657
  %v1668 = vmul.f32 %v1631, %v1657
  %v1669 = vmul.f32 %v1634, %v1657
  %v1670 = vmul.f32 %v1639, %v1657
  %v1671 = vmul.f32 %v1642, %v1657
  %v1672 = vmul.f32 %v1647, %v1657
  %v1673 = vmul.f32 %v1650, %v1657
  %v1674 = vld [vmem:[%s2 + $0x1] sm:$0x1]
  %v1675 = vlaneseq
  %v1676 = vshrl.u32 %v1675, 7
  %v1677 = vsub.s32 0, %v1676
  %v1678 = vrot.slane %v1674, %v1677
  %v1679 = vadd.f32 %v1658, %v1678
  %v1680 = vadd.f32 %v1659, %v1678
  %v1681 = vadd.f32 %v1660, %v1678
  %v1682 = vadd.f32 %v1661, %v1678
  %v1683 = vadd.f32 %v1662, %v1678
  %v1684 = vadd.f32 %v1663, %v1678
  %v1685 = vadd.f32 %v1664, %v1678
  %v1686 = vadd.f32 %v1665, %v1678
  %v1687 = vadd.f32 %v1666, %v1678
  %v1688 = vadd.f32 %v1667, %v1678
  %v1689 = vadd.f32 %v1668, %v1678
  %v1690 = vadd.f32 %v1669, %v1678
  %v1691 = vadd.f32 %v1670, %v1678
  %v1692 = vadd.f32 %v1671, %v1678
  %v1693 = vadd.f32 %v1672, %v1678
  %v1694 = vadd.f32 %v1673, %v1678
  %v1695 = vmax.f32 %v1679, 0.0
  %v1696 = vmax.f32 %v1680, 0.0
  %v1697 = vmax.f32 %v1681, 0.0
  %v1698 = vmax.f32 %v1682, 0.0
  %v1699 = vmax.f32 %v1683, 0.0
  %v1700 = vmax.f32 %v1684, 0.0
  %v1701 = vmax.f32 %v1685, 0.0
  %v1702 = vmax.f32 %v1686, 0.0
  %v1703 = vmax.f32 %v1687, 0.0
  %v1704 = vmax.f32 %v1688, 0.0
  %v1705 = vmax.f32 %v1689, 0.0
  %v1706 = vmax.f32 %v1690, 0.0
  %v1707 = vmax.f32 %v1691, 0.0
  %v1708 = vmax.f32 %v1692, 0.0
  %v1709 = vmax.f32 %v1693, 0.0
  %v1710 = vmax.f32 %v1694, 0.0
  %v1711 = vmin.f32 %v1695, 6.0
  %v1712 = vmin.f32 %v1696, 6.0
  %v1713 = vmin.f32 %v1697, 6.0
  %v1714 = vmin.f32 %v1698, 6.0
  %v1715 = vmin.f32 %v1699, 6.0
  %v1716 = vmin.f32 %v1700, 6.0
  %v1717 = vmin.f32 %v1701, 6.0
  %v1718 = vmin.f32 %v1702, 6.0
  %v1719 = vmin.f32 %v1703, 6.0
  %v1720 = vmin.f32 %v1704, 6.0
  %v1721 = vmin.f32 %v1705, 6.0
  %v1722 = vmin.f32 %v1706, 6.0
  %v1723 = vmin.f32 %v1707, 6.0
  %v1724 = vmin.f32 %v1708, 6.0
  %v1725 = vmin.f32 %v1709, 6.0
  %v1726 = vmin.f32 %v1710, 6.0
  %1727 = vst [vmem:[%s3] sm:$0xff] %v1711
  %1728 = vst [vmem:[%s3 + $0x8] sm:$0xff] %v1712
  %1729 = vst [vmem:[%s3 + $0x10] sm:$0xff] %v1713
  %1730 = vst [vmem:[%s3 + $0x18] sm:$0xff] %v1714
  %1731 = vst [vmem:[%s3 + $0x20] sm:$0xff] %v1715
  %1732 = vst [vmem:[%s3 + $0x28] sm:$0xff] %v1716
  %1733 = vst [vmem:[%s3 + $0x30] sm:$0xff] %v1717
  %1734 = vst [vmem:[%s3 + $0x38] sm:$0xff] %v1718
  %1735 = vst [vmem:[%s3 + $0x40] sm:$0xff] %v1719
  %1736 = vst [vmem:[%s3 + $0x48] sm:$0xff] %v1720
  %1737 = vst [vmem:[%s3 + $0x50] sm:$0xff] %v1721
  %1738 = vst [vmem:[%s3 + $0x58] sm:$0xff] %v1722
  %1739 = vst [vmem:[%s3 + $0x60] sm:$0xff] %v1723
  %1740 = vst [vmem:[%s3 + $0x68] sm:$0xff] %v1724
  %1741 = vst [vmem:[%s3 + $0x70] sm:$0xff] %v1725
  %1742 = vst [vmem:[%s3 + $0x78] sm:$0xff] %v1726
  // Predicated region
  $region14: #{conv_bn_relu6.1} parent=0 // pred_check
    _
  $region15: #{conv_bn_relu6.1} parent=0 // pred_check_branch
    %1744 = sbr.rel (0) target = $region17
  $region16: #{conv_bn_relu6.1} parent=0 // pred_region
    _
  $region17: #{conv_bn_relu6.1} parent=0 // pred_fallthru
    _
  // Predicated region
  $region18: #{conv_bn_relu6.1} parent=0 // pred_check
    _
  $region19: #{conv_bn_relu6.1} parent=0 // pred_check_branch
    %1746 = sbr.rel (0) target = $region21
  $region20: #{conv_bn_relu6.1} parent=0 // pred_region
    _
  $region21: #{conv_bn_relu6.1} parent=0 // pred_fallthru
    _

</llo_original>
